<compile_context>
chip_gen: v7x
topology: tpu7x:2x2x1
jax: 0.10.0
libtpu: 0.0.40
codegen_flags: <defaults>
</compile_context>

<pallas_src>
import functools
import math

import jax
import jax.numpy as jnp
from jax.experimental import pallas as pl
from jax.experimental.pallas import tpu as pltpu

_LANE = 128          # vreg lane width
_SUBLANE = 8         # vreg sublane count (f32)
_TS_MAX = 512        # sublane-tile cap: 3*512*128*4B ~= 0.75 MiB/block,
                     # ~3 MiB with in+out double buffering -> fits every chip.

_TWO_PI = 2.0 * math.pi
_TWO_PI_3 = 2.0 * math.pi / 3.0
_FOUR_PI_3 = 4.0 * math.pi / 3.0
_PI_3 = math.pi / 3.0


def hsi_to_rgb_kernel(x_ref, o_ref, *, eps):
    # Block: (1, 3, TS, 128).  Read each channel slab straight from the ref.
    h = x_ref[0, 0].astype(jnp.float32)
    s = x_ref[0, 1].astype(jnp.float32)
    i = x_ref[0, 2].astype(jnp.float32)

    # torch: h.clamp(0, 2pi); s.clamp(0, 1); i.clamp(0, 1)
    h = jnp.clip(h, 0.0, _TWO_PI)
    s = jnp.clip(s, 0.0, 1.0)
    i = jnp.clip(i, 0.0, 1.0)
    # torch: h[h >= 2pi] -= 2pi  (only h == 2pi can trigger after the clamp)
    h = jnp.where(h >= _TWO_PI, h - _TWO_PI, h)

    # torch (sequential in-place updates on h_):
    #   h_[h_ > 4pi/3] -= 4pi/3 ; h_[h_ > 2pi/3] -= 2pi/3
    h_ = jnp.where(h > _FOUR_PI_3, h - _FOUR_PI_3, h)
    h_ = jnp.where(h_ > _TWO_PI_3, h_ - _TWO_PI_3, h_)

    # Denominator cos(pi/3 - h_) >= 0.5 for h_ in [0, 2pi/3]; exact divide kept
    # to preserve reference semantics (kernel is memory-bound anyway).
    c = jnp.cos(h_) / (jnp.cos(_PI_3 - h_) + eps)

    # Disjoint hue sectors (h in [0, 2pi)):
    #   sector1: h <  2pi/3          -> r = c,     g = 1 - c, b = -1
    #   sector2: 2pi/3 <= h <= 4pi/3 -> r = -1,    g = c,     b = 1 - c
    #   sector3: h >  4pi/3          -> r = 1 - c, g = -1,    b = c
    m1 = h < _TWO_PI_3
    m2 = jnp.logical_and(h >= _TWO_PI_3, h <= _FOUR_PI_3)
    m3 = h > _FOUR_PI_3

    one_minus_c = 1.0 - c
    r = jnp.where(m2, -1.0, jnp.where(m3, one_minus_c, c))
    g = jnp.where(m1, one_minus_c, jnp.where(m3, -1.0, c))
    b = jnp.where(m1, -1.0, jnp.where(m2, one_minus_c, c))

    # out = stack(r, g, b) * i * s + i
    si = s * i
    o_ref[0, 0] = (r * si + i).astype(o_ref.dtype)
    o_ref[0, 1] = (g * si + i).astype(o_ref.dtype)
    o_ref[0, 2] = (b * si + i).astype(o_ref.dtype)


def _round_up(x, m):
    return -(-x // m) * m


def hsi_to_rgb(image, eps=1e-8):
    """Pallas equivalent of HsiToRgb().forward(image). image: (*, 3, H, W)."""
    if image.ndim < 3 or image.shape[-3] != 3:
        raise ValueError(f"Input size must have a shape of (*, 3, H, W). Got {image.shape}")

    lead = image.shape[:-3]
    H, W = image.shape[-2], image.shape[-1]
    B = math.prod(lead) if lead else 1
    N = H * W

    # Lane-dense, (8, 128)-aligned spatial slab: (B, 3, S, 128).
    S = _round_up(_round_up(N, _LANE) // _LANE, _SUBLANE)
    if S <= _TS_MAX:
        TS = S
    else:
        TS = _TS_MAX
        S = _round_up(S, TS)
    N_pad = S * _LANE

    x = image.reshape(B, 3, N)
    if N_pad != N:
        # Zero padding is safe: denominator stays >= 0.5 + eps, no NaN/Inf.
        x = jnp.pad(x, ((0, 0), (0, 0), (0, N_pad - N)))
    x = x.reshape(B, 3, S, _LANE)

    kernel = functools.partial(hsi_to_rgb_kernel, eps=eps)
    out = pl.pallas_call(
        kernel,
        out_shape=jax.ShapeDtypeStruct((B, 3, S, _LANE), image.dtype),
        grid=(B, S // TS),
        in_specs=[pl.BlockSpec((1, 3, TS, _LANE), lambda b, t: (b, 0, t, 0))],
        out_specs=pl.BlockSpec((1, 3, TS, _LANE), lambda b, t: (b, 0, t, 0)),
        compiler_params=pltpu.CompilerParams(
            dimension_semantics=("parallel", "parallel")),
    )(x)

    out = out.reshape(B, 3, N_pad)[:, :, :N]
    return out.reshape(*lead, 3, H, W)


class HsiToRgb:
    """JAX/Pallas port of the PyTorch HsiToRgb module (no learnable params)."""

    def __init__(self, eps: float = 1e-8):
        self.eps = eps

    def __call__(self, image):
        return hsi_to_rgb(image, self.eps)


def _hsi_to_rgb_ref(image, eps):
    """Pure-jnp reference mirroring the torch hsi_to_rgb math."""
    h = jnp.clip(image[..., 0, :, :], 0.0, _TWO_PI)
    s = jnp.clip(image[..., 1, :, :], 0.0, 1.0)
    i = jnp.clip(image[..., 2, :, :], 0.0, 1.0)
    h = jnp.where(h >= _TWO_PI, h - _TWO_PI, h)
    h_ = jnp.where(h > _FOUR_PI_3, h - _FOUR_PI_3, h)
    h_ = jnp.where(h_ > _TWO_PI_3, h_ - _TWO_PI_3, h_)
    c = jnp.cos(h_) / (jnp.cos(_PI_3 - h_) + eps)
    m1 = h < _TWO_PI_3
    m2 = jnp.logical_and(h >= _TWO_PI_3, h <= _FOUR_PI_3)
    m3 = h > _FOUR_PI_3
    r = jnp.where(m2, -1.0, jnp.where(m3, 1.0 - c, c))
    g = jnp.where(m1, 1.0 - c, jnp.where(m3, -1.0, c))
    b = jnp.where(m1, -1.0, jnp.where(m2, 1.0 - c, c))
    rgb = jnp.stack((r, g, b), axis=-3)
    return rgb * (s * i)[..., None, :, :] + i[..., None, :, :]


if __name__ == "__main__":
    key = jax.random.PRNGKey(0)
    kh, ks, ki = jax.random.split(key, 3)
    # (*, 3, H, W): H channel in [0, 2pi), S and I in [0, 1].
    Bn, Hh, Ww = 2, 16, 16
    h = jax.random.uniform(kh, (Bn, 1, Hh, Ww), jnp.float32) * _TWO_PI
    s = jax.random.uniform(ks, (Bn, 1, Hh, Ww), jnp.float32)
    i = jax.random.uniform(ki, (Bn, 1, Hh, Ww), jnp.float32)
    x = jnp.concatenate([h, s, i], axis=1)   # (2, 3, 16, 16)

    mod = HsiToRgb(eps=1e-8)
    out = jax.block_until_ready(mod(x))

    assert out.shape == x.shape and out.dtype == x.dtype
    assert bool(jnp.all(jnp.isfinite(out)))

    ref = _hsi_to_rgb_ref(x, 1e-8)
    assert bool(jnp.allclose(out, ref, atol=1e-5, rtol=1e-5))
    print("KERNEL_OK")
</pallas_src>

<mosaic_0001>
module attributes {stable_mosaic.version = 11 : i64} {
  func.func @hsi_to_rgb_kernel(%arg0: i32, %arg1: i32, %arg2: memref<1x3x8x128xf32, #tpu.memory_space<vmem>>, %arg3: memref<1x3x8x128xf32, #tpu.memory_space<vmem>>) attributes {dimension_semantics = [#tpu.dimension_semantics<parallel>, #tpu.dimension_semantics<parallel>], iteration_bounds = array<i64: 2, 1>, scalar_prefetch = 0 : i64, scratch_operands = 0 : i64, tpu.core_type = #tpu.core_type<tc>, window_params = [{transform_indices = @transform_0, window_bounds = array<i64: 1, 3, 8, 128>}, {transform_indices = @transform_1, window_bounds = array<i64: 1, 3, 8, 128>}]} {
    %c0 = arith.constant 0 : index
    %c0_0 = arith.constant 0 : index
    %c0_1 = arith.constant 0 : index
    %c0_2 = arith.constant 0 : index
    %0 = vector.load %arg2[%c0, %c0_0, %c0_1, %c0_2] : memref<1x3x8x128xf32, #tpu.memory_space<vmem>>, vector<1x1x8x128xf32>
    %1 = vector.shape_cast %0 : vector<1x1x8x128xf32> to vector<8x128xf32>
    %c0_3 = arith.constant 0 : index
    %c1 = arith.constant 1 : index
    %c0_4 = arith.constant 0 : index
    %c0_5 = arith.constant 0 : index
    %2 = vector.load %arg2[%c0_3, %c1, %c0_4, %c0_5] : memref<1x3x8x128xf32, #tpu.memory_space<vmem>>, vector<1x1x8x128xf32>
    %3 = vector.shape_cast %2 : vector<1x1x8x128xf32> to vector<8x128xf32>
    %c0_6 = arith.constant 0 : index
    %c2 = arith.constant 2 : index
    %c0_7 = arith.constant 0 : index
    %c0_8 = arith.constant 0 : index
    %4 = vector.load %arg2[%c0_6, %c2, %c0_7, %c0_8] : memref<1x3x8x128xf32, #tpu.memory_space<vmem>>, vector<1x1x8x128xf32>
    %5 = vector.shape_cast %4 : vector<1x1x8x128xf32> to vector<8x128xf32>
    %cst = arith.constant 0.000000e+00 : f32
    %cst_9 = arith.constant 6.28318548 : f32
    %6 = vector.broadcast %cst : f32 to vector<8x128xf32>
    %7 = arith.maximumf %6, %1 : vector<8x128xf32>
    %8 = vector.broadcast %cst_9 : f32 to vector<8x128xf32>
    %9 = arith.minimumf %8, %7 : vector<8x128xf32>
    %cst_10 = arith.constant 0.000000e+00 : f32
    %cst_11 = arith.constant 1.000000e+00 : f32
    %10 = vector.broadcast %cst_10 : f32 to vector<8x128xf32>
    %11 = arith.maximumf %10, %3 : vector<8x128xf32>
    %12 = vector.broadcast %cst_11 : f32 to vector<8x128xf32>
    %13 = arith.minimumf %12, %11 : vector<8x128xf32>
    %cst_12 = arith.constant 0.000000e+00 : f32
    %cst_13 = arith.constant 1.000000e+00 : f32
    %14 = vector.broadcast %cst_12 : f32 to vector<8x128xf32>
    %15 = arith.maximumf %14, %5 : vector<8x128xf32>
    %16 = vector.broadcast %cst_13 : f32 to vector<8x128xf32>
    %17 = arith.minimumf %16, %15 : vector<8x128xf32>
    %cst_14 = arith.constant 6.28318548 : f32
    %18 = vector.broadcast %cst_14 : f32 to vector<8x128xf32>
    %19 = arith.cmpf oge, %9, %18 : vector<8x128xf32>
    %cst_15 = arith.constant 6.28318548 : f32
    %20 = vector.broadcast %cst_15 : f32 to vector<8x128xf32>
    %21 = arith.subf %9, %20 : vector<8x128xf32>
    %22 = arith.select %19, %21, %9 : vector<8x128xi1>, vector<8x128xf32>
    %cst_16 = arith.constant 4.18879032 : f32
    %23 = vector.broadcast %cst_16 : f32 to vector<8x128xf32>
    %24 = arith.cmpf ogt, %22, %23 : vector<8x128xf32>
    %cst_17 = arith.constant 4.18879032 : f32
    %25 = vector.broadcast %cst_17 : f32 to vector<8x128xf32>
    %26 = arith.subf %22, %25 : vector<8x128xf32>
    %27 = arith.select %24, %26, %22 : vector<8x128xi1>, vector<8x128xf32>
    %cst_18 = arith.constant 2.09439516 : f32
    %28 = vector.broadcast %cst_18 : f32 to vector<8x128xf32>
    %29 = arith.cmpf ogt, %27, %28 : vector<8x128xf32>
    %cst_19 = arith.constant 2.09439516 : f32
    %30 = vector.broadcast %cst_19 : f32 to vector<8x128xf32>
    %31 = arith.subf %27, %30 : vector<8x128xf32>
    %32 = arith.select %29, %31, %27 : vector<8x128xi1>, vector<8x128xf32>
    %33 = math.cos %32 : vector<8x128xf32>
    %cst_20 = arith.constant 1.04719758 : f32
    %34 = vector.broadcast %cst_20 : f32 to vector<8x128xf32>
    %35 = arith.subf %34, %32 : vector<8x128xf32>
    %36 = math.cos %35 : vector<8x128xf32>
    %cst_21 = arith.constant 9.99999993E-9 : f32
    %37 = vector.broadcast %cst_21 : f32 to vector<8x128xf32>
    %38 = arith.addf %36, %37 : vector<8x128xf32>
    %39 = arith.divf %33, %38 : vector<8x128xf32>
    %cst_22 = arith.constant 2.09439516 : f32
    %40 = vector.broadcast %cst_22 : f32 to vector<8x128xf32>
    %41 = arith.cmpf olt, %22, %40 : vector<8x128xf32>
    %cst_23 = arith.constant 2.09439516 : f32
    %42 = vector.broadcast %cst_23 : f32 to vector<8x128xf32>
    %43 = arith.cmpf oge, %22, %42 : vector<8x128xf32>
    %cst_24 = arith.constant 4.18879032 : f32
    %44 = vector.broadcast %cst_24 : f32 to vector<8x128xf32>
    %45 = arith.cmpf ole, %22, %44 : vector<8x128xf32>
    %46 = arith.andi %43, %45 : vector<8x128xi1>
    %cst_25 = arith.constant 4.18879032 : f32
    %47 = vector.broadcast %cst_25 : f32 to vector<8x128xf32>
    %48 = arith.cmpf ogt, %22, %47 : vector<8x128xf32>
    %cst_26 = arith.constant 1.000000e+00 : f32
    %49 = vector.broadcast %cst_26 : f32 to vector<8x128xf32>
    %50 = arith.subf %49, %39 : vector<8x128xf32>
    %51 = arith.select %48, %50, %39 : vector<8x128xi1>, vector<8x128xf32>
    %cst_27 = arith.constant -1.000000e+00 : f32
    %52 = vector.broadcast %cst_27 : f32 to vector<8x128xf32>
    %53 = arith.select %46, %52, %51 : vector<8x128xi1>, vector<8x128xf32>
    %cst_28 = arith.constant -1.000000e+00 : f32
    %54 = vector.broadcast %cst_28 : f32 to vector<8x128xf32>
    %55 = arith.select %48, %54, %39 : vector<8x128xi1>, vector<8x128xf32>
    %56 = arith.select %41, %50, %55 : vector<8x128xi1>, vector<8x128xf32>
    %57 = arith.select %46, %50, %39 : vector<8x128xi1>, vector<8x128xf32>
    %cst_29 = arith.constant -1.000000e+00 : f32
    %58 = vector.broadcast %cst_29 : f32 to vector<8x128xf32>
    %59 = arith.select %41, %58, %57 : vector<8x128xi1>, vector<8x128xf32>
    %60 = arith.mulf %13, %17 : vector<8x128xf32>
    %61 = arith.mulf %53, %60 : vector<8x128xf32>
    %62 = arith.addf %61, %17 : vector<8x128xf32>
    %c0_30 = arith.constant 0 : index
    %c0_31 = arith.constant 0 : index
    %c0_32 = arith.constant 0 : index
    %c0_33 = arith.constant 0 : index
    %63 = vector.load %arg3[%c0_30, %c0_31, %c0_32, %c0_33] : memref<1x3x8x128xf32, #tpu.memory_space<vmem>>, vector<1x1x8x128xf32>
    %64 = vector.shape_cast %63 : vector<1x1x8x128xf32> to vector<8x128xf32>
    %65 = vector.shape_cast %62 : vector<8x128xf32> to vector<1x1x8x128xf32>
    tpu.vector_store %arg3[%c0_30, %c0_31, %c0_32, %c0_33], %65 {strides = array<i32>} : memref<1x3x8x128xf32, #tpu.memory_space<vmem>>, vector<1x1x8x128xf32>,
    %66 = arith.mulf %56, %60 : vector<8x128xf32>
    %67 = arith.addf %66, %17 : vector<8x128xf32>
    %c0_34 = arith.constant 0 : index
    %c1_35 = arith.constant 1 : index
    %c0_36 = arith.constant 0 : index
    %c0_37 = arith.constant 0 : index
    %68 = vector.load %arg3[%c0_34, %c1_35, %c0_36, %c0_37] : memref<1x3x8x128xf32, #tpu.memory_space<vmem>>, vector<1x1x8x128xf32>
    %69 = vector.shape_cast %68 : vector<1x1x8x128xf32> to vector<8x128xf32>
    %70 = vector.shape_cast %67 : vector<8x128xf32> to vector<1x1x8x128xf32>
    tpu.vector_store %arg3[%c0_34, %c1_35, %c0_36, %c0_37], %70 {strides = array<i32>} : memref<1x3x8x128xf32, #tpu.memory_space<vmem>>, vector<1x1x8x128xf32>,
    %71 = arith.mulf %59, %60 : vector<8x128xf32>
    %72 = arith.addf %71, %17 : vector<8x128xf32>
    %c0_38 = arith.constant 0 : index
    %c2_39 = arith.constant 2 : index
    %c0_40 = arith.constant 0 : index
    %c0_41 = arith.constant 0 : index
    %73 = vector.load %arg3[%c0_38, %c2_39, %c0_40, %c0_41] : memref<1x3x8x128xf32, #tpu.memory_space<vmem>>, vector<1x1x8x128xf32>
    %74 = vector.shape_cast %73 : vector<1x1x8x128xf32> to vector<8x128xf32>
    %75 = vector.shape_cast %72 : vector<8x128xf32> to vector<1x1x8x128xf32>
    tpu.vector_store %arg3[%c0_38, %c2_39, %c0_40, %c0_41], %75 {strides = array<i32>} : memref<1x3x8x128xf32, #tpu.memory_space<vmem>>, vector<1x1x8x128xf32>,
    return
  }
  func.func @transform_0(%arg0: i32, %arg1: i32) -> (i32, i32, i32, i32) {
    %c0_i32 = arith.constant 0 : i32
    %c0_i32_0 = arith.constant 0 : i32
    %c0_i32_1 = arith.constant 0 : i32
    return %arg0, %c0_i32, %arg1, %c0_i32_0 : i32, i32, i32, i32
  }
  func.func @transform_1(%arg0: i32, %arg1: i32) -> (i32, i32, i32, i32) {
    %c0_i32 = arith.constant 0 : i32
    %c0_i32_0 = arith.constant 0 : i32
    %c0_i32_1 = arith.constant 0 : i32
    return %arg0, %c0_i32, %arg1, %c0_i32_0 : i32, i32, i32, i32
  }
}

</mosaic_0001>

<llo_original>
// kernel: tpu_custom_call.1
$region0: #{tpu_custom_call.1}
  #allocation0 [shape = 'u32[]', space=smem, size = 0x4, offset = 0x4, fixed_abs, tag = 'smem constant byte address 0x4 - core index']
  #allocation1 [shape = 'u32[144,128]{1,0:T(1,128)}', space=vmem, size = 0x12000, scoped, tag = 'internal scratch']
  %s0 = inlined_call_operand.hbm [shape: f32[2,3,8,128], index: 0, kind: input, shape index: {}]
  %s1 = inlined_call_operand.hbm [shape: f32[2,3,8,128], index: 1, kind: output, shape index: {}]
  %s2 = sld [smem:[#allocation0]]
  $region41: #{tpu_custom_call.1} parent=0
    _
  %s4 = ssub.s32 1, %s2
  %s5 = scalar_select 0, %s4, %s2
  $region1: #{tpu_custom_call.1} parent=0
    #allocation2 [shape = 'u8[24576]{0}', space=vmem, size = 0x6000, scoped, tag = 'input window, operand 0']
    #allocation3 [shape = 's32[2]{0}', space=sflag, size = 0x8, scoped, tag = 'scoped memory for tpu_custom_call.1']
    #allocation4 [shape = 's32[2]{0}', space=sflag, size = 0x8, scoped, tag = 'scoped memory for tpu_custom_call.1']
    #allocation5 [shape = 'u8[24576]{0}', space=vmem, size = 0x6000, scoped, tag = 'output window, operand 0']
    %6 = vsyncpa [#allocation3], 0
    %s7 = scalar_lea.sflag [#allocation3], 1
    %8 = vsyncpa %s7, 0
    %9 = vsyncpa [#allocation4], 0
    %s10 = scalar_lea.sflag [#allocation4], 1
    %11 = vsyncpa %s10, 0
    loop: start=0, step=1, limit=4
    $region2: #{tpu_custom_call.1} parent=1 // loop_pre_header
      _
    $region3: #{tpu_custom_call.1} parent=1 // loop_header
      %s13 = sphi 0, %s17
      %p14 = scmp.ge.s32.totalorder %s13, 4
      %s20 = sphi 0, %s32
      %s21 = sphi 0, %s28
      %s22 = sphi 0, %s20
      %s23 = sphi 0, %s21
      %s24 = sphi 0, %s22
      %s25 = sphi 0, %s23
      %s37 = sphi 0, %s39
      %s40 = sphi 0, %s37
      %s41 = sphi 0, %s40
      %s57 = sphi 0, %s41
      %s65 = sphi 0, %s67
      %s68 = sphi 0, %s65
      %s69 = sphi 0, %s68
      %s85 = sphi 0, %s69
    $region4: #{tpu_custom_call.1} parent=1 // loop_header_branch
      %16 = sbr.rel (%p14) target = $region8
    $region5: #{tpu_custom_call.1} parent=1 // loop_body
      %s18 = ssub.s32 %s13, 1
      %s19 = ssub.s32 %s13, 2
      %s26 = sadd.s32 1, %s21
      %p27 = scmp.ge.s32.totalorder %s26, 1
      %s28 = scalar_select %p27, 0, %s26
      %s29 = sadd.s32 1, %s20
      %s30 = scalar_select %p27, %s29, %s20
      %p31 = scmp.ge.s32.totalorder %s30, 2
      %s32 = scalar_select %p31, 0, %s30
      %s33 = ssub.s32 %s20, %s32
      %s34 = ssub.s32 %s21, %s28
      %s35 = sor.u32 %s33, %s34
      %p36 = scmp.eq.s32.totalorder %s35, 0
      %s38 = sadd.s32 %s37, 1
      %s39 = scalar_select %p36, %s37, %s38
      %p42 = pneg %p36
      %p43 = scmp.eq.s32.totalorder %s13, 1
      %p44 = por %p42, %p43
      %p45 = scmp.ne.s32.totalorder %s37, %s40
      %p46 = scmp.eq.s32.totalorder %s13, 0
      %p47 = por %p45, %p46
      %p48 = scmp.ne.s32.totalorder %s37, %s40
      %p49 = scmp.eq.s32.totalorder %s18, 1
      %p50 = por %p48, %p49
      %p51 = scmp.ne.s32.totalorder %s40, %s41
      %p52 = scmp.eq.s32.totalorder %s18, 0
      %p53 = por %p51, %p52
      %p54 = scmp.ne.s32.totalorder %s40, %s41
      %p55 = scmp.eq.s32.totalorder %s19, 1
      %p56 = por %p54, %p55
      %p58 = scmp.ne.s32.totalorder %s41, %s57
      %p59 = scmp.eq.s32.totalorder %s19, 0
      %p60 = por %p58, %p59
      %s61 = ssub.s32 %s20, %s32
      %s62 = ssub.s32 %s21, %s28
      %s63 = sor.u32 %s61, %s62
      %p64 = scmp.eq.s32.totalorder %s63, 0
      %s66 = sadd.s32 %s65, 1
      %s67 = scalar_select %p64, %s65, %s66
      %p70 = pneg %p64
      %p71 = scmp.eq.s32.totalorder %s13, 1
      %p72 = por %p70, %p71
      %p73 = scmp.ne.s32.totalorder %s65, %s68
      %p74 = scmp.eq.s32.totalorder %s13, 0
      %p75 = por %p73, %p74
      %p76 = scmp.ne.s32.totalorder %s65, %s68
      %p77 = scmp.eq.s32.totalorder %s18, 1
      %p78 = por %p76, %p77
      %p79 = scmp.ne.s32.totalorder %s68, %s69
      %p80 = scmp.eq.s32.totalorder %s18, 0
      %p81 = por %p79, %p80
      %p82 = scmp.ne.s32.totalorder %s68, %s69
      %p83 = scmp.eq.s32.totalorder %s19, 1
      %p84 = por %p82, %p83
      %p86 = scmp.ne.s32.totalorder %s69, %s85
      %p87 = scmp.eq.s32.totalorder %s19, 0
      %p88 = por %p86, %p87
      %p89 = scmp.le.s32.totalorder 1, %s13
      %p90 = scmp.lt.s32.totalorder %s13, 3
      %p91 = pnand %p89, %p90
      %p92 = pneg %p91
      // Predicated region
      $region9: #{tpu_custom_call.1} parent=5 // pred_check
        _
      $region10: #{tpu_custom_call.1} parent=5 // pred_check_branch
        %94 = sbr.rel (%p91) target = $region12
      $region11: #{tpu_custom_call.1} parent=5 // pred_region
        %s95 = ssub.s32 %s13, 1
      $region12: #{tpu_custom_call.1} parent=5 // pred_fallthru
        _
      %p96 = scmp.lt.s32.totalorder %s13, 2
      // Predicated region
      $region13: #{tpu_custom_call.1} parent=5 // pred_check
        %p97 = pneg %p96
      $region14: #{tpu_custom_call.1} parent=5 // pred_check_branch
        %99 = sbr.rel (%p97) target = $region16
      $region15: #{tpu_custom_call.1} parent=5 // pred_region
        // Predicated region
        $region17: #{tpu_custom_call.1} parent=15 // pred_check
          %p100 = pneg %p47
        $region18: #{tpu_custom_call.1} parent=15 // pred_check_branch
          %102 = sbr.rel (%p100) target = $region20
        $region19: #{tpu_custom_call.1} parent=15 // pred_region
          %s103 = sand.u32 %s37, 1
          %s104 = scalar_lea.sflag [#allocation3], %s103
          %s105 = sand.u32 %s37, 1
          %s106 = smul.addr %s105, 24
          %s107 = scalar_lea.vmem [#allocation2], %s106
          %s109 = ssub.s32 384, 384
          %110 = vsyncadd %s104, %s109
          %s111 = smul.addr %s20, 3
          %s112 = sadd.s32 %s21, %s111
          %s113 = smul.addr %s112, 128
          %s114 = scalar_lea.hbm %s0, %s113
          %s115 = sshll.u32 %s107, 4
          %s116 = int_to_ptr.vmem [resolvable:$true] %s115
          %121 = dma.hbm_to_vmem [thread:$0]  %s114, 384, %s116, %s104, 128, 128, 8
        $region20: #{tpu_custom_call.1} parent=15 // pred_fallthru
          _
      $region16: #{tpu_custom_call.1} parent=5 // pred_fallthru
        _
      %p122 = scmp.le.s32.totalorder 1, %s13
      %p123 = scmp.lt.s32.totalorder %s13, 3
      %p124 = pnand %p122, %p123
      %p125 = pneg %p124
      // Predicated region
      $region21: #{tpu_custom_call.1} parent=5 // pred_check
        _
      $region22: #{tpu_custom_call.1} parent=5 // pred_check_branch
        %127 = sbr.rel (%p124) target = $region24
      $region23: #{tpu_custom_call.1} parent=5 // pred_region
        %s128 = ssub.s32 %s13, 1
        %s129 = sand.u32 %s40, 1
        %s130 = scalar_lea.sflag [#allocation3], %s129
        %s131 = sand.u32 %s40, 1
        %s132 = smul.addr %s131, 24
        %s133 = scalar_lea.vmem [#allocation2], %s132
        // Predicated region
        $region25: #{tpu_custom_call.1} parent=23 // pred_check
          %p134 = pneg %p53
        $region26: #{tpu_custom_call.1} parent=23 // pred_check_branch
          %136 = sbr.rel (%p134) target = $region28
        $region27: #{tpu_custom_call.1} parent=23 // pred_region
          %137 = dma.done %s130, 384
        $region28: #{tpu_custom_call.1} parent=23 // pred_fallthru
          _
        %s138 = sand.u32 %s40, 1
        %s139 = scalar_lea.sflag [#allocation3], %s138
        %s140 = sand.u32 %s40, 1
        %s141 = smul.addr %s140, 24
        %s142 = scalar_lea.vmem [#allocation2], %s141
        %p143 = pneg %p53
        %p144 = pneg %p50
        %p145 = pneg %p81
        %p146 = pneg %p78
        %s147 = sand.u32 %s68, 1
        %s148 = scalar_lea.sflag [#allocation4], %s147
        %s149 = sand.u32 %s68, 1
        %s150 = smul.addr %s149, 24
        %s151 = scalar_lea.vmem [#allocation5], %s150
        %v152 = vld [vmem:[%s133] sm:$0xff]
        %s153 = scalar_lea.vmem %s133, 8 [#allocation2]
        %v154 = vld [vmem:[%s153] sm:$0xff]
        %s155 = scalar_lea.vmem %s133, 16 [#allocation2]
        %v156 = vld [vmem:[%s155] sm:$0xff]
        %v157 = vmax.f32 %v152, 0.0
        %v158 = vmin.f32 %v157, 6.2831855
        %v159 = vmax.f32 %v154, 0.0
        %v160 = vmin.f32 %v159, 1.0
        %v161 = vmax.f32 %v156, 0.0
        %v162 = vmin.f32 %v161, 1.0
        %vm163 = vcmp.ge.f32.partialorder %v158, 6.2831855
        %v164 = vsub.f32 %v158, 6.2831855
        %v165 = vsel %vm163, %v164, %v158
        %vm166 = vcmp.gt.f32.partialorder %v165, 4.1887903
        %v167 = vsub.f32 %v165, 4.1887903
        %v168 = vsel %vm166, %v167, %v165
        %vm169 = vcmp.gt.f32.partialorder %v168, 2.0943952
        %v170 = vsub.f32 %v168, 2.0943952
        %v171 = vsel %vm169, %v170, %v168
        %v172 = vand.u32 2147483647, %v171
        %vm173 = vcmp.le.f32.partialorder %v172, 0.7853982
        %vm174 = vcmp.lt.s32.totalorder %v171, 0
        %v175 = vand.u32 %v171, 2139095040
        %v176 = vshrl.u32 %v175, 23
        %v177 = vsub.s32 %v176, 127
        %v178 = vand.u32 2147483647, %v171
        %v179 = vand.u32 %v178, 8388607
        %v180 = vor.u32 %v179, 8388608
        %v181 = vsub.s32 0, %v180
        %v182 = vadd.s32 %v177, 1
        %vm183 = vcmp.gt.s32.totalorder %v182, 0
        %v184 = vsel %vm183, %v182, 0
        %v185 = vshrl.u32 %v184, 5
        %v186 = vand.u32 %v184, 31
        %v187 = vsub.s32 32, %v186
        %v188 = vshrl.u32 683565275, %v187
        %v189 = vshll.u32 683565275, %v186
        %v190 = vshrl.u32 2475754826, %v187
        %v191 = vor.u32 %v189, %v190
        %v192 = vshll.u32 2475754826, %v186
        %v193 = vshrl.u32 2131351028, %v187
        %v194 = vor.u32 %v192, %v193
        %v195 = vshll.u32 2131351028, %v186
        %v196 = vshrl.u32 2102212464, %v187
        %v197 = vor.u32 %v195, %v196
        %v198 = vshll.u32 2102212464, %v186
        %v199 = vshrl.u32 920167782, %v187
        %v200 = vor.u32 %v198, %v199
        %v201 = vshll.u32 920167782, %v186
        %v202 = vshrl.u32 1326507024, %v187
        %v203 = vor.u32 %v201, %v202
        %vm204 = vcmp.lt.s32.totalorder %v185, 1
        %vm205 = vcmp.lt.s32.totalorder %v185, 2
        %vm206 = vcmp.lt.s32.totalorder %v185, 3
        %vm207 = vcmp.lt.s32.totalorder %v185, 4
        %v208 = vsel %vm204, %v188, %v191
        %v209 = vsel %vm207, %v197, 2102212464
        %v210 = vsel %vm206, %v194, %v209
        %v211 = vsel %vm205, %v208, %v210
        %v212 = vsel %vm204, %v191, %v194
        %v213 = vsel %vm207, %v200, 920167782
        %v214 = vsel %vm206, %v197, %v213
        %v215 = vsel %vm205, %v212, %v214
        %v216 = vsel %vm204, %v194, %v197
        %v217 = vsel %vm207, %v203, 1326507024
        %v218 = vsel %vm206, %v200, %v217
        %v219 = vsel %vm205, %v216, %v218
        %v220 = vshll.u32 %v180, 8
        %v221 = vmul.u32.u64.compose %v220, %v219
        %v222 = vextract.low.u32 %v221
        %v223 = vextract.high.u32 %v221
        %v224 = vmul.u32.u64.compose %v220, %v215
        %v225 = vextract.low.u32 %v224
        %v226 = vextract.high.u32 %v224
        %v227 = vmul.u32 %v220, %v211
        %v228 = vadd.s32 %v223, %v225
        %vm229 = vc.u32 %v223, %v225
        %v230 = vadd.s32 %v226, 1
        %v231 = vsel %vm229, %v230, %v226
        %v232 = vadd.s32 %v227, %v231
        %v233 = vadd.s32 %v232, 536870912
        %v234 = vshrl.u32 %v233, 30
        %v235 = vshll.u32 %v234, 30
        %v236 = vsub.s32 %v232, %v235
        %vm237 = vcmp.lt.s32.totalorder %v236, 0
        %v238 = vsub.s32 0, %v236
        %v239 = vsel %vm237, %v238, %v236
        %v240 = vclz %v239
        %v241 = vsub.s32 %v240, 2
        %vm242 = vcmp.gt.s32.totalorder 0, %v241
        %v243 = vsel %vm242, 0, %v241
        %v244 = vsub.s32 32, %v243
        %v245 = vshll.u32 %v236, %v243
        %v246 = vshrl.u32 %v228, %v244
        %v247 = vor.u32 %v245, %v246
        %v248 = vsub.s32 4294967266, %v243
        %v249 = vadd.s32 %v248, 127
        %v250 = vshll.u32 %v249, 23
        %v251 = vor.u32 4788187, %v250
        %v252 = vand.u32 2147483647, %v251
        %v254 = vcvt.s32.f32 %v247
        %v255 = vmul.f32 %v254, %v252
        %v256 = vxor.u32 %v255, 2147483648
        %v257 = vsel %vm174, %v256, %v255
        %v258 = vsub.s32 4, %v234
        %v259 = vsel %vm174, %v258, %v234
        %v260 = vsel %vm173, %v171, %v257
        %v261 = vsel %vm173, 0, %v259
        %v262 = vcosq.f32.pop %v260
        %v263 = vsinq.f32.pop %v260
        %vm264 = vweird.f32 %v171
        %v265 = vand.u32 %v261, 3
        %vm266 = vcmp.lt.s32.totalorder %v265, 2
        %vm267 = vcmp.eq.s32.totalorder %v265, 0
        %v268 = vxor.u32 %v263, 2147483648
        %v269 = vsel %vm267, %v262, %v268
        %vm270 = vcmp.eq.s32.totalorder %v265, 2
        %v271 = vxor.u32 %v262, 2147483648
        %v272 = vsel %vm270, %v271, %v263
        %v273 = vsel %vm266, %v269, %v272
        %v274 = vsel %vm264, nan, %v273
        %v275 = vsub.f32 1.0471976, %v171
        %v276 = vand.u32 2147483647, %v275
        %vm277 = vcmp.le.f32.partialorder %v276, 0.7853982
        %vm278 = vcmp.lt.s32.totalorder %v275, 0
        %v279 = vand.u32 %v275, 2139095040
        %v280 = vshrl.u32 %v279, 23
        %v281 = vsub.s32 %v280, 127
        %v282 = vand.u32 2147483647, %v275
        %v283 = vand.u32 %v282, 8388607
        %v284 = vor.u32 %v283, 8388608
        %v285 = vsub.s32 0, %v284
        %v286 = vadd.s32 %v281, 1
        %vm287 = vcmp.gt.s32.totalorder %v286, 0
        %v288 = vsel %vm287, %v286, 0
        %v289 = vshrl.u32 %v288, 5
        %v290 = vand.u32 %v288, 31
        %v291 = vsub.s32 32, %v290
        %v292 = vshrl.u32 683565275, %v291
        %v293 = vshll.u32 683565275, %v290
        %v294 = vshrl.u32 2475754826, %v291
        %v295 = vor.u32 %v293, %v294
        %v296 = vshll.u32 2475754826, %v290
        %v297 = vshrl.u32 2131351028, %v291
        %v298 = vor.u32 %v296, %v297
        %v299 = vshll.u32 2131351028, %v290
        %v300 = vshrl.u32 2102212464, %v291
        %v301 = vor.u32 %v299, %v300
        %v302 = vshll.u32 2102212464, %v290
        %v303 = vshrl.u32 920167782, %v291
        %v304 = vor.u32 %v302, %v303
        %v305 = vshll.u32 920167782, %v290
        %v306 = vshrl.u32 1326507024, %v291
        %v307 = vor.u32 %v305, %v306
        %vm308 = vcmp.lt.s32.totalorder %v289, 1
        %vm309 = vcmp.lt.s32.totalorder %v289, 2
        %vm310 = vcmp.lt.s32.totalorder %v289, 3
        %vm311 = vcmp.lt.s32.totalorder %v289, 4
        %v312 = vsel %vm308, %v292, %v295
        %v313 = vsel %vm311, %v301, 2102212464
        %v314 = vsel %vm310, %v298, %v313
        %v315 = vsel %vm309, %v312, %v314
        %v316 = vsel %vm308, %v295, %v298
        %v317 = vsel %vm311, %v304, 920167782
        %v318 = vsel %vm310, %v301, %v317
        %v319 = vsel %vm309, %v316, %v318
        %v320 = vsel %vm308, %v298, %v301
        %v321 = vsel %vm311, %v307, 1326507024
        %v322 = vsel %vm310, %v304, %v321
        %v323 = vsel %vm309, %v320, %v322
        %v324 = vshll.u32 %v284, 8
        %v325 = vmul.u32.u64.compose %v324, %v323
        %v326 = vextract.low.u32 %v325
        %v327 = vextract.high.u32 %v325
        %v328 = vmul.u32.u64.compose %v324, %v319
        %v329 = vextract.low.u32 %v328
        %v330 = vextract.high.u32 %v328
        %v331 = vmul.u32 %v324, %v315
        %v332 = vadd.s32 %v327, %v329
        %vm333 = vc.u32 %v327, %v329
        %v334 = vadd.s32 %v330, 1
        %v335 = vsel %vm333, %v334, %v330
        %v336 = vadd.s32 %v331, %v335
        %v337 = vadd.s32 %v336, 536870912
        %v338 = vshrl.u32 %v337, 30
        %v339 = vshll.u32 %v338, 30
        %v340 = vsub.s32 %v336, %v339
        %vm341 = vcmp.lt.s32.totalorder %v340, 0
        %v342 = vsub.s32 0, %v340
        %v343 = vsel %vm341, %v342, %v340
        %v344 = vclz %v343
        %v345 = vsub.s32 %v344, 2
        %vm346 = vcmp.gt.s32.totalorder 0, %v345
        %v347 = vsel %vm346, 0, %v345
        %v348 = vsub.s32 32, %v347
        %v349 = vshll.u32 %v340, %v347
        %v350 = vshrl.u32 %v332, %v348
        %v351 = vor.u32 %v349, %v350
        %v352 = vsub.s32 4294967266, %v347
        %v353 = vadd.s32 %v352, 127
        %v354 = vshll.u32 %v353, 23
        %v355 = vor.u32 4788187, %v354
        %v356 = vand.u32 2147483647, %v355
        %v358 = vcvt.s32.f32 %v351
        %v359 = vmul.f32 %v358, %v356
        %v360 = vxor.u32 %v359, 2147483648
        %v361 = vsel %vm278, %v360, %v359
        %v362 = vsub.s32 4, %v338
        %v363 = vsel %vm278, %v362, %v338
        %v364 = vsel %vm277, %v275, %v361
        %v365 = vsel %vm277, 0, %v363
        %v366 = vcosq.f32.pop %v364
        %v367 = vsinq.f32.pop %v364
        %vm368 = vweird.f32 %v275
        %v369 = vand.u32 %v365, 3
        %vm370 = vcmp.lt.s32.totalorder %v369, 2
        %vm371 = vcmp.eq.s32.totalorder %v369, 0
        %v372 = vxor.u32 %v367, 2147483648
        %v373 = vsel %vm371, %v366, %v372
        %vm374 = vcmp.eq.s32.totalorder %v369, 2
        %v375 = vxor.u32 %v366, 2147483648
        %v376 = vsel %vm374, %v375, %v367
        %v377 = vsel %vm370, %v373, %v376
        %v378 = vsel %vm368, nan, %v377
        %v379 = vadd.f32 %v378, 1e-08
        %v380 = vrcp.pop %v379
        %v381 = vmul.f32 %v274, %v380
        %vm382 = vcmp.lt.f32.partialorder %v165, 2.0943952
        %vm383 = vcmp.ge.f32.partialorder %v165, 2.0943952
        %vm384 = vcmp.le.f32.partialorder %v165, 4.1887903
        %vm385 = vmand %vm383, %vm384
        %v386 = vsub.f32 1.0, %v381
        %v387 = vsel %vm166, %v386, %v381
        %v388 = vsel %vm385, -1.0, %v387
        %v389 = vsel %vm166, -1.0, %v381
        %v390 = vsel %vm382, %v386, %v389
        %v391 = vsel %vm385, %v386, %v381
        %v392 = vsel %vm382, -1.0, %v391
        %v393 = vmul.f32 %v160, %v162
        %v394 = vmul.f32 %v388, %v393
        %v395 = vadd.f32 %v394, %v162
        %396 = vst [vmem:[%s151] sm:$0xff] %v395
        %v397 = vmul.f32 %v390, %v393
        %v398 = vadd.f32 %v397, %v162
        %s399 = scalar_lea.vmem %s151, 8 [#allocation5]
        %400 = vst [vmem:[%s399] sm:$0xff] %v398
        %v401 = vmul.f32 %v392, %v393
        %v402 = vadd.f32 %v401, %v162
        %s403 = scalar_lea.vmem %s151, 16 [#allocation5]
        %404 = vst [vmem:[%s403] sm:$0xff] %v402
        %s405 = sand.u32 %s68, 1
        %s406 = scalar_lea.sflag [#allocation4], %s405
        %s407 = sand.u32 %s68, 1
        %s408 = smul.addr %s407, 24
        %s409 = scalar_lea.vmem [#allocation5], %s408
        // Predicated region
        $region29: #{tpu_custom_call.1} parent=23 // pred_check
          %p410 = pneg %p78
        $region30: #{tpu_custom_call.1} parent=23 // pred_check_branch
          %412 = sbr.rel (%p410) target = $region32
        $region31: #{tpu_custom_call.1} parent=23 // pred_region
          %s414 = ssub.s32 384, 384
          %415 = vsyncadd %s406, %s414
          %s416 = smul.addr %s22, 3
          %s417 = sadd.s32 %s23, %s416
          %s418 = smul.addr %s417, 128
          %s419 = scalar_lea.hbm %s1, %s418
          %s420 = sshll.u32 %s409, 4
          %s421 = int_to_ptr.vmem [resolvable:$true] %s420
          %426 = dma.vmem_to_hbm [thread:$0]  %s421, 384, %s419, %s406, 128, 128, 8
        $region32: #{tpu_custom_call.1} parent=23 // pred_fallthru
          _
      $region24: #{tpu_custom_call.1} parent=5 // pred_fallthru
        _
      %p427 = scmp.le.s32.totalorder 2, %s13
      // Predicated region
      $region33: #{tpu_custom_call.1} parent=5 // pred_check
        %p428 = pneg %p427
      $region34: #{tpu_custom_call.1} parent=5 // pred_check_branch
        %430 = sbr.rel (%p428) target = $region36
      $region35: #{tpu_custom_call.1} parent=5 // pred_region
        %s431 = ssub.s32 %s13, 2
        // Predicated region
        $region37: #{tpu_custom_call.1} parent=35 // pred_check
          %p432 = pneg %p84
        $region38: #{tpu_custom_call.1} parent=35 // pred_check_branch
          %434 = sbr.rel (%p432) target = $region40
        $region39: #{tpu_custom_call.1} parent=35 // pred_region
          %s435 = sand.u32 %s69, 1
          %s436 = scalar_lea.sflag [#allocation4], %s435
          %s437 = sand.u32 %s69, 1
          %s438 = smul.addr %s437, 24
          %s439 = scalar_lea.vmem [#allocation5], %s438
          %440 = dma.done %s436, 384
        $region40: #{tpu_custom_call.1} parent=35 // pred_fallthru
          _
      $region36: #{tpu_custom_call.1} parent=5 // pred_fallthru
        _
    $region6: #{tpu_custom_call.1} parent=1 // loop_footer
      %s17 = sadd.s32 1, %s13
    $region7: #{tpu_custom_call.1} parent=1 // loop_footer_branch
      %12 = sbr.rel target = $region3
    $region8: #{tpu_custom_call.1} parent=1 // loop_exit
      _
    %441 = vsyncpa [#allocation3], 1
    %s442 = scalar_lea.sflag [#allocation3], 1
    %443 = vsyncpa %s442, 1
    %444 = vsyncpa [#allocation4], 1
    %s445 = scalar_lea.sflag [#allocation4], 1
    %446 = vsyncpa %s445, 1

</llo_original>
